<compile_context>
chip_gen: v7x
topology: tpu7x:2x2x1
jax: 0.10.0
libtpu: 0.0.40
codegen_flags: <defaults>
</compile_context>

<pallas_src>
import functools
import math

import jax
import jax.numpy as jnp
from jax import lax
from jax.experimental import pallas as pl
from jax.experimental.pallas import tpu as pltpu


# ---------------------------------------------------------------------------
# Kernel
# ---------------------------------------------------------------------------
def _attn_kernel(q_ref, k_ref, v_ref, o_ref, s_ref, *, scale, mask_flag,
                 dynamic_mask_scale, num_heads, e_dim, d_dim):
    """One block of `bb` batch elements, all heads.

    q_ref: (bb, L, H*E)   k_ref: (bb, S, H*E)   v_ref: (bb, S, H*D)
    o_ref: (bb, L, H*D)   s_ref: (bb, H, L, S)
    """
    bb, L, _ = q_ref.shape
    S = k_ref.shape[1]

    # Static (L, S) mask shared across batch elements and heads, turned into an
    # additive -inf bias and broadcast ONCE (hoisted out of the head loop).
    row = lax.broadcasted_iota(jnp.int32, (L, S), 0)
    col = lax.broadcasted_iota(jnp.int32, (L, S), 1)
    if dynamic_mask_scale is not None:
        # create_diag_symmetric_mask: (i, j) masked iff |i - j| >= diagonal.
        mask2d = jnp.abs(col - row) >= dynamic_mask_scale
    elif mask_flag:
        # TriangularCausalMask: strict upper triangle masked.
        mask2d = col > row
    else:
        mask2d = None
    if mask2d is not None:
        bias = jnp.broadcast_to(
            jnp.where(mask2d, -jnp.inf, 0.0).astype(jnp.float32)[None],
            (bb, L, S))
    else:
        bias = None

    for h in range(num_heads):
        # Per-head operand loads come straight off the VMEM refs inside the
        # loop (bounds vreg live ranges vs. loading the whole slabs up front).
        qh = q_ref[:, :, h * e_dim:(h + 1) * e_dim]      # (bb, L, E) native dtype
        kh = k_ref[:, :, h * e_dim:(h + 1) * e_dim]      # (bb, S, E)
        vh = v_ref[:, :, h * d_dim:(h + 1) * d_dim]      # (bb, S, D)

        # scores = scale * einsum('ble,bse->bls'); MXU consumes native dtype,
        # accumulates in f32.
        scores = jnp.einsum('ble,bse->bls', qh, kh,
                            preferred_element_type=jnp.float32) * scale
        if bias is not None:
            scores = scores + bias

        # softmax over S in f32 (attention_dropout = 0.0 is an exact no-op).
        m = jnp.max(scores, axis=-1, keepdims=True)
        p = jnp.exp(scores - m)
        series = p * pl.reciprocal(jnp.sum(p, axis=-1, keepdims=True),
                                   approx=True)

        # Head index is a *major* dim of s_ref -> contiguous (L, S) write into
        # the output VMEM block; HBM writeback is one whole-block DMA per step.
        s_ref[:, h, :, :] = series.astype(s_ref.dtype)

        # PV matmul in the value dtype (native bf16 MXU rate on v6e/v7x) with
        # f32 accumulation; write the head's lane slice of the V block directly
        # (no Python list of live per-head results).
        out_h = jnp.einsum('bls,bsd->bld', series.astype(v_ref.dtype), vh,
                           preferred_element_type=jnp.float32)
        o_ref[:, :, h * d_dim:(h + 1) * d_dim] = out_h.astype(o_ref.dtype)


# ---------------------------------------------------------------------------
# VMEM sizing (padding + double-buffering aware, generation aware)
# ---------------------------------------------------------------------------
def _round_up(x, m):
    return ((x + m - 1) // m) * m


def _padded_bytes(shape, dtype):
    """VMEM bytes one buffer of `shape` occupies, incl. (sublane, lane) padding."""
    itemsize = jnp.dtype(dtype).itemsize
    sublane = 8 * max(1, 4 // itemsize)            # 8 f32 / 16 bf16 / 32 int8
    if len(shape) == 0:
        return 4
    if len(shape) == 1:
        return _round_up(int(shape[0]) * itemsize, 512)
    lead = 1
    for d in shape[:-2]:
        lead *= int(d)
    rows, cols = int(shape[-2]), int(shape[-1])
    return lead * _round_up(rows, sublane) * _round_up(cols, 128) * itemsize


def _vmem_per_step(bb, L, S, H, E, D, in_dtype, out_dtype):
    """Conservative VMEM bytes for one grid step with batch-block `bb`."""
    # Pallas double-buffers every BlockSpec'd input AND output block.
    blocks = 2 * (
        _padded_bytes((bb, L, H * E), in_dtype)          # q slab
        + _padded_bytes((bb, S, H * E), in_dtype)        # k slab
        + _padded_bytes((bb, S, H * D), in_dtype)        # v slab
        + _padded_bytes((bb, L, H * D), out_dtype)       # V output
        + _padded_bytes((bb, H, L, S), out_dtype))       # series (S pads to 128)
    # Live f32 intermediates of one head iteration (scores / exp / series /
    # softmax stats), the hoisted mask bias, the PV result, plus slack for
    # Mosaic temporaries and dtype-cast copies.
    live = (5 * _padded_bytes((bb, L, S), jnp.float32)
            + _padded_bytes((bb, L, D), jnp.float32)
            + 2 * _padded_bytes((bb, L, H * E), jnp.float32))
    return blocks + live


def _vmem_capacity_bytes():
    """Per-core VMEM capacity; conservative (v7x) fallback if unqueryable."""
    try:
        info = pltpu.get_tpu_info()
        cap = int(getattr(info, "vmem_capacity_bytes", 0) or 0)
        if cap > 0:
            return cap
    except Exception:  # not a TPU backend / API unavailable
        pass
    return 64 * 1024 * 1024


def _choose_block_b(batch, L, S, H, E, D, in_dtype, out_dtype, budget_bytes):
    """Largest divisor of `batch` whose per-step VMEM fits the budget, keeping
    >= 4 grid steps when possible (>= 2 pipelined steps per v7x TensorCore)."""
    if batch >= 4:
        min_steps = 4
    else:
        min_steps = min(batch, 2)
    best = 1
    for cand in range(1, batch + 1):
        if batch % cand:
            continue
        if batch // cand < min_steps:
            break
        if _vmem_per_step(cand, L, S, H, E, D, in_dtype, out_dtype) <= budget_bytes:
            best = cand
    return best


# ---------------------------------------------------------------------------
# Wrapper
# ---------------------------------------------------------------------------
def anomaly_attention(queries, keys, values, sigma=None, attn_mask=None, *,
                      mask_flag=True, scale=None, dynamic_mask_scale=None):
    """JAX/Pallas equivalent of AnomalyAttention.forward.

    queries: (B, L, H, E), keys: (B, S, H, E), values: (B, S, H, D).
    sigma is accepted for signature parity but (as in the PyTorch forward) unused.
    Returns (V, series) with V: (B, L, H, D), series: (B, H, L, S).

    Note: dynamic_mask_scale <= 0 masks entire rows and (exactly like the
    PyTorch code) produces NaN softmax rows; meaningful values are >= 1.
    """
    del sigma  # unused by the PyTorch forward as well
    if attn_mask is not None:
        # TODO(synk): user-supplied attention masks are not plumbed through; only
        # the built-in causal / diag-symmetric masks are generated in-kernel.
        raise NotImplementedError(
            "anomaly_attention only supports the built-in causal / "
            "diag-symmetric masks (attn_mask must be None).")

    B, L, H, E = queries.shape
    _, S, _, D = values.shape
    scale_val = float(scale) if scale is not None else 1.0 / math.sqrt(E)
    out_dtype = queries.dtype

    # Free reshapes: merge trailing contiguous dims, no transpose, no upcast.
    q3 = queries.reshape(B, L, H * E)
    k3 = keys.reshape(B, S, H * E)
    v3 = values.reshape(B, S, H * D)

    # Generation-aware VMEM limits: ~64 MiB limit on v5e/v6e (128 MiB physical),
    # ~48 MiB on v7x (64 MiB per TC); block budget capped so the full
    # padding/double-buffering-aware estimate stays well inside the limit.
    vmem_cap = _vmem_capacity_bytes()
    vmem_limit = min(int(0.75 * vmem_cap), 64 * 1024 * 1024)
    budget = min(24 * 1024 * 1024, vmem_limit // 2)
    bb = _choose_block_b(B, L, S, H, E, D, queries.dtype, out_dtype, budget)
    grid = (B // bb,)

    kernel = functools.partial(
        _attn_kernel, scale=scale_val, mask_flag=mask_flag,
        dynamic_mask_scale=dynamic_mask_scale, num_heads=H, e_dim=E, d_dim=D)

    in_itemsize = jnp.dtype(queries.dtype).itemsize
    out_itemsize = jnp.dtype(out_dtype).itemsize
    cost = pl.CostEstimate(
        flops=2 * B * H * L * S * (E + D),
        transcendentals=B * H * L * S,
        bytes_accessed=(B * (L * H * E + S * H * E + S * H * D) * in_itemsize
                        + B * (L * H * D + H * L * S) * out_itemsize))

    v_flat, series = pl.pallas_call(
        kernel,
        out_shape=(
            jax.ShapeDtypeStruct((B, L, H * D), out_dtype),
            jax.ShapeDtypeStruct((B, H, L, S), out_dtype),
        ),
        grid=grid,
        in_specs=[
            pl.BlockSpec((bb, L, H * E), lambda i: (i, 0, 0)),
            pl.BlockSpec((bb, S, H * E), lambda i: (i, 0, 0)),
            pl.BlockSpec((bb, S, H * D), lambda i: (i, 0, 0)),
        ],
        out_specs=(
            pl.BlockSpec((bb, L, H * D), lambda i: (i, 0, 0)),
            pl.BlockSpec((bb, H, L, S), lambda i: (i, 0, 0, 0)),
        ),
        compiler_params=pltpu.CompilerParams(
            dimension_semantics=("parallel",),
            vmem_limit_bytes=vmem_limit,
        ),
        cost_estimate=cost,
    )(q3, k3, v3)

    V = v_flat.reshape(B, L, H, D)   # free reshape back to the PyTorch layout
    return V, series


# ---------------------------------------------------------------------------
# Pure-JAX reference (mirrors the PyTorch forward) for verification
# ---------------------------------------------------------------------------
def _reference(queries, keys, values, *, mask_flag=True, scale=None,
               dynamic_mask_scale=None):
    B, L, H, E = queries.shape
    _, S, _, D = values.shape
    scale_val = scale if scale is not None else 1.0 / math.sqrt(E)
    scores = jnp.einsum('blhe,bshe->bhls', queries, keys)
    i = jnp.arange(L)[:, None]
    j = jnp.arange(S)[None, :]
    if dynamic_mask_scale is not None:
        mask = jnp.abs(j - i) >= dynamic_mask_scale
        scores = jnp.where(mask[None, None], -jnp.inf, scores)
    elif mask_flag:
        mask = j > i
        scores = jnp.where(mask[None, None], -jnp.inf, scores)
    attn = scale_val * scores
    series = jax.nn.softmax(attn, axis=-1)
    V = jnp.einsum('bhls,bshd->blhd', series, values)
    return V, series


if __name__ == "__main__":
    # Small shapes consistent with the module: win_size=L=S=8, heads=4, head dims=32.
    B, L, H, E, D = 2, 8, 4, 32, 32
    key = jax.random.PRNGKey(0)
    kq, kk, kv, ks = jax.random.split(key, 4)
    queries = jax.random.normal(kq, (B, L, H, E), dtype=jnp.float32)
    keys_ = jax.random.normal(kk, (B, L, H, E), dtype=jnp.float32)
    values = jax.random.normal(kv, (B, L, H, D), dtype=jnp.float32)
    sigma = jax.random.normal(ks, (B, L, H), dtype=jnp.float32)  # unused by forward

    # 1) Default causal-mask path.
    V, series = anomaly_attention(queries, keys_, values, sigma, None,
                                  mask_flag=True, scale=None,
                                  dynamic_mask_scale=None)
    jax.block_until_ready((V, series))
    V_ref, series_ref = _reference(queries, keys_, values, mask_flag=True)
    assert V.shape == (B, L, H, D)
    assert series.shape == (B, H, L, L)
    # Tolerance accounts for the approximate (EUP) reciprocal in the softmax.
    assert jnp.allclose(V, V_ref, atol=3e-3, rtol=3e-3)
    assert jnp.allclose(series, series_ref, atol=3e-3, rtol=3e-3)

    # 2) Diag-symmetric dynamic-mask path.
    V2, series2 = anomaly_attention(queries, keys_, values, sigma, None,
                                    mask_flag=True, scale=None,
                                    dynamic_mask_scale=3)
    jax.block_until_ready((V2, series2))
    V2_ref, series2_ref = _reference(queries, keys_, values, mask_flag=True,
                                     dynamic_mask_scale=3)
    assert jnp.allclose(V2, V2_ref, atol=3e-3, rtol=3e-3)
    assert jnp.allclose(series2, series2_ref, atol=3e-3, rtol=3e-3)

    print("KERNEL_OK")
</pallas_src>

<mosaic_0001>
module attributes {stable_mosaic.version = 11 : i64} {
  func.func @_attn_kernel(%arg0: i32, %arg1: memref<1x8x128xf32, #tpu.memory_space<vmem>>, %arg2: memref<1x8x128xf32, #tpu.memory_space<vmem>>, %arg3: memref<1x8x128xf32, #tpu.memory_space<vmem>>, %arg4: memref<1x8x128xf32, #tpu.memory_space<vmem>>, %arg5: memref<1x4x8x8xf32, #tpu.memory_space<vmem>>) attributes {dimension_semantics = [#tpu.dimension_semantics<parallel>], iteration_bounds = array<i64: 2>, scalar_prefetch = 0 : i64, scratch_operands = 0 : i64, tpu.core_type = #tpu.core_type<tc>, window_params = [{transform_indices = @transform_0, window_bounds = array<i64: 1, 8, 128>}, {transform_indices = @transform_1, window_bounds = array<i64: 1, 8, 128>}, {transform_indices = @transform_2, window_bounds = array<i64: 1, 8, 128>}, {transform_indices = @transform_3, window_bounds = array<i64: 1, 8, 128>}, {transform_indices = @transform_4, window_bounds = array<i64: 1, 4, 8, 8>}]} {
    %0 = tpu.iota {dimensions = array<i32: 0>} : vector<8x8xi32>
    %1 = tpu.iota {dimensions = array<i32: 1>} : vector<8x8xi32>
    %2 = arith.cmpi sgt, %1, %0 : vector<8x8xi32>
    %cst = arith.constant 0xFF800000 : f32
    %cst_0 = arith.constant 0.000000e+00 : f32
    %3 = vector.broadcast %cst : f32 to vector<8x8xf32>
    %4 = vector.broadcast %cst_0 : f32 to vector<8x8xf32>
    %5 = arith.select %2, %3, %4 : vector<8x8xi1>, vector<8x8xf32>
    %6 = vector.shape_cast %5 : vector<8x8xf32> to vector<1x8x8xf32>
    %c0 = arith.constant 0 : index
    %c0_1 = arith.constant 0 : index
    %c0_2 = arith.constant 0 : index
    %7 = vector.load %arg1[%c0, %c0_1, %c0_2] : memref<1x8x128xf32, #tpu.memory_space<vmem>>, vector<1x8x32xf32>
    %c0_3 = arith.constant 0 : index
    %c0_4 = arith.constant 0 : index
    %c0_5 = arith.constant 0 : index
    %8 = vector.load %arg2[%c0_3, %c0_4, %c0_5] : memref<1x8x128xf32, #tpu.memory_space<vmem>>, vector<1x8x32xf32>
    %c0_6 = arith.constant 0 : index
    %c0_7 = arith.constant 0 : index
    %c0_8 = arith.constant 0 : index
    %9 = vector.load %arg3[%c0_6, %c0_7, %c0_8] : memref<1x8x128xf32, #tpu.memory_space<vmem>>, vector<1x8x32xf32>
    "tpu.trace_start"() <{level = 10 : i32, message = "ble,bse->bls"}> : () -> ()
    %cst_9 = arith.constant dense<0.000000e+00> : vector<1x8x8xf32>
    %10 = tpu.matmul %7, %8, %cst_9 {dimension_numbers = #tpu.dot_dimension_numbers<[2], [2], [1], [1], [0, 0, 0, 1, 1, 1], [0], [0]>} : vector<1x8x32xf32>, vector<1x8x32xf32>, vector<1x8x8xf32> -> vector<1x8x8xf32>
    "tpu.trace_stop"() : () -> ()
    %cst_10 = arith.constant 0.176776692 : f32
    %11 = vector.broadcast %cst_10 : f32 to vector<1x8x8xf32>
    %12 = arith.mulf %10, %11 : vector<1x8x8xf32>
    %13 = arith.addf %12, %6 : vector<1x8x8xf32>
    %cst_11 = arith.constant dense<0xFF800000> : vector<1x8xf32>
    %14 = vector.multi_reduction <maximumf>, %13, %cst_11 [2] : vector<1x8x8xf32> to vector<1x8xf32>
    %15 = vector.shape_cast %14 : vector<1x8xf32> to vector<1x8x1xf32>
    %16 = vector.broadcast %15 : vector<1x8x1xf32> to vector<1x8x8xf32>
    %17 = arith.subf %13, %16 : vector<1x8x8xf32>
    %18 = math.exp %17 : vector<1x8x8xf32>
    %cst_12 = arith.constant dense<0.000000e+00> : vector<1x8xf32>
    %19 = vector.multi_reduction <add>, %18, %cst_12 [2] : vector<1x8x8xf32> to vector<1x8xf32>
    %20 = vector.shape_cast %19 : vector<1x8xf32> to vector<1x8x1xf32>
    %21 = tpu.reciprocal %20 {approx = true} : vector<1x8x1xf32> -> vector<1x8x1xf32>
    %22 = vector.broadcast %21 : vector<1x8x1xf32> to vector<1x8x8xf32>
    %23 = arith.mulf %18, %22 : vector<1x8x8xf32>
    %c0_13 = arith.constant 0 : index
    %c0_14 = arith.constant 0 : index
    %c0_15 = arith.constant 0 : index
    %c0_16 = arith.constant 0 : index
    %24 = vector.load %arg5[%c0_13, %c0_14, %c0_15, %c0_16] : memref<1x4x8x8xf32, #tpu.memory_space<vmem>>, vector<1x1x8x8xf32>
    %25 = vector.shape_cast %24 : vector<1x1x8x8xf32> to vector<1x8x8xf32>
    %26 = vector.shape_cast %23 : vector<1x8x8xf32> to vector<1x1x8x8xf32>
    tpu.vector_store %arg5[%c0_13, %c0_14, %c0_15, %c0_16], %26 {strides = array<i32>} : memref<1x4x8x8xf32, #tpu.memory_space<vmem>>, vector<1x1x8x8xf32>,
    "tpu.trace_start"() <{level = 10 : i32, message = "bls,bsd->bld"}> : () -> ()
    %cst_17 = arith.constant dense<0.000000e+00> : vector<1x8x32xf32>
    %27 = tpu.matmul %23, %9, %cst_17 {dimension_numbers = #tpu.dot_dimension_numbers<[2], [1], [1], [2], [0, 0, 0, 1, 1, 2], [0], [0]>} : vector<1x8x8xf32>, vector<1x8x32xf32>, vector<1x8x32xf32> -> vector<1x8x32xf32>
    "tpu.trace_stop"() : () -> ()
    %c0_18 = arith.constant 0 : index
    %c0_19 = arith.constant 0 : index
    %c0_20 = arith.constant 0 : index
    %28 = vector.load %arg4[%c0_18, %c0_19, %c0_20] : memref<1x8x128xf32, #tpu.memory_space<vmem>>, vector<1x8x32xf32>
    tpu.vector_store %arg4[%c0_18, %c0_19, %c0_20], %27 {strides = array<i32>} : memref<1x8x128xf32, #tpu.memory_space<vmem>>, vector<1x8x32xf32>,
    %c0_21 = arith.constant 0 : index
    %c0_22 = arith.constant 0 : index
    %c32 = arith.constant 32 : index
    %29 = vector.load %arg1[%c0_21, %c0_22, %c32] : memref<1x8x128xf32, #tpu.memory_space<vmem>>, vector<1x8x32xf32>
    %c0_23 = arith.constant 0 : index
    %c0_24 = arith.constant 0 : index
    %c32_25 = arith.constant 32 : index
    %30 = vector.load %arg2[%c0_23, %c0_24, %c32_25] : memref<1x8x128xf32, #tpu.memory_space<vmem>>, vector<1x8x32xf32>
    %c0_26 = arith.constant 0 : index
    %c0_27 = arith.constant 0 : index
    %c32_28 = arith.constant 32 : index
    %31 = vector.load %arg3[%c0_26, %c0_27, %c32_28] : memref<1x8x128xf32, #tpu.memory_space<vmem>>, vector<1x8x32xf32>
    "tpu.trace_start"() <{level = 10 : i32, message = "ble,bse->bls"}> : () -> ()
    %cst_29 = arith.constant dense<0.000000e+00> : vector<1x8x8xf32>
    %32 = tpu.matmul %29, %30, %cst_29 {dimension_numbers = #tpu.dot_dimension_numbers<[2], [2], [1], [1], [0, 0, 0, 1, 1, 1], [0], [0]>} : vector<1x8x32xf32>, vector<1x8x32xf32>, vector<1x8x8xf32> -> vector<1x8x8xf32>
    "tpu.trace_stop"() : () -> ()
    %cst_30 = arith.constant 0.176776692 : f32
    %33 = vector.broadcast %cst_30 : f32 to vector<1x8x8xf32>
    %34 = arith.mulf %32, %33 : vector<1x8x8xf32>
    %35 = arith.addf %34, %6 : vector<1x8x8xf32>
    %cst_31 = arith.constant dense<0xFF800000> : vector<1x8xf32>
    %36 = vector.multi_reduction <maximumf>, %35, %cst_31 [2] : vector<1x8x8xf32> to vector<1x8xf32>
    %37 = vector.shape_cast %36 : vector<1x8xf32> to vector<1x8x1xf32>
    %38 = vector.broadcast %37 : vector<1x8x1xf32> to vector<1x8x8xf32>
    %39 = arith.subf %35, %38 : vector<1x8x8xf32>
    %40 = math.exp %39 : vector<1x8x8xf32>
    %cst_32 = arith.constant dense<0.000000e+00> : vector<1x8xf32>
    %41 = vector.multi_reduction <add>, %40, %cst_32 [2] : vector<1x8x8xf32> to vector<1x8xf32>
    %42 = vector.shape_cast %41 : vector<1x8xf32> to vector<1x8x1xf32>
    %43 = tpu.reciprocal %42 {approx = true} : vector<1x8x1xf32> -> vector<1x8x1xf32>
    %44 = vector.broadcast %43 : vector<1x8x1xf32> to vector<1x8x8xf32>
    %45 = arith.mulf %40, %44 : vector<1x8x8xf32>
    %c0_33 = arith.constant 0 : index
    %c1 = arith.constant 1 : index
    %c0_34 = arith.constant 0 : index
    %c0_35 = arith.constant 0 : index
    %46 = vector.load %arg5[%c0_33, %c1, %c0_34, %c0_35] : memref<1x4x8x8xf32, #tpu.memory_space<vmem>>, vector<1x1x8x8xf32>
    %47 = vector.shape_cast %46 : vector<1x1x8x8xf32> to vector<1x8x8xf32>
    %48 = vector.shape_cast %45 : vector<1x8x8xf32> to vector<1x1x8x8xf32>
    tpu.vector_store %arg5[%c0_33, %c1, %c0_34, %c0_35], %48 {strides = array<i32>} : memref<1x4x8x8xf32, #tpu.memory_space<vmem>>, vector<1x1x8x8xf32>,
    "tpu.trace_start"() <{level = 10 : i32, message = "bls,bsd->bld"}> : () -> ()
    %cst_36 = arith.constant dense<0.000000e+00> : vector<1x8x32xf32>
    %49 = tpu.matmul %45, %31, %cst_36 {dimension_numbers = #tpu.dot_dimension_numbers<[2], [1], [1], [2], [0, 0, 0, 1, 1, 2], [0], [0]>} : vector<1x8x8xf32>, vector<1x8x32xf32>, vector<1x8x32xf32> -> vector<1x8x32xf32>
    "tpu.trace_stop"() : () -> ()
    %c0_37 = arith.constant 0 : index
    %c0_38 = arith.constant 0 : index
    %c32_39 = arith.constant 32 : index
    %50 = vector.load %arg4[%c0_37, %c0_38, %c32_39] : memref<1x8x128xf32, #tpu.memory_space<vmem>>, vector<1x8x32xf32>
    tpu.vector_store %arg4[%c0_37, %c0_38, %c32_39], %49 {strides = array<i32>} : memref<1x8x128xf32, #tpu.memory_space<vmem>>, vector<1x8x32xf32>,
    %c0_40 = arith.constant 0 : index
    %c0_41 = arith.constant 0 : index
    %c64 = arith.constant 64 : index
    %51 = vector.load %arg1[%c0_40, %c0_41, %c64] : memref<1x8x128xf32, #tpu.memory_space<vmem>>, vector<1x8x32xf32>
    %c0_42 = arith.constant 0 : index
    %c0_43 = arith.constant 0 : index
    %c64_44 = arith.constant 64 : index
    %52 = vector.load %arg2[%c0_42, %c0_43, %c64_44] : memref<1x8x128xf32, #tpu.memory_space<vmem>>, vector<1x8x32xf32>
    %c0_45 = arith.constant 0 : index
    %c0_46 = arith.constant 0 : index
    %c64_47 = arith.constant 64 : index
    %53 = vector.load %arg3[%c0_45, %c0_46, %c64_47] : memref<1x8x128xf32, #tpu.memory_space<vmem>>, vector<1x8x32xf32>
    "tpu.trace_start"() <{level = 10 : i32, message = "ble,bse->bls"}> : () -> ()
    %cst_48 = arith.constant dense<0.000000e+00> : vector<1x8x8xf32>
    %54 = tpu.matmul %51, %52, %cst_48 {dimension_numbers = #tpu.dot_dimension_numbers<[2], [2], [1], [1], [0, 0, 0, 1, 1, 1], [0], [0]>} : vector<1x8x32xf32>, vector<1x8x32xf32>, vector<1x8x8xf32> -> vector<1x8x8xf32>
    "tpu.trace_stop"() : () -> ()
    %cst_49 = arith.constant 0.176776692 : f32
    %55 = vector.broadcast %cst_49 : f32 to vector<1x8x8xf32>
    %56 = arith.mulf %54, %55 : vector<1x8x8xf32>
    %57 = arith.addf %56, %6 : vector<1x8x8xf32>
    %cst_50 = arith.constant dense<0xFF800000> : vector<1x8xf32>
    %58 = vector.multi_reduction <maximumf>, %57, %cst_50 [2] : vector<1x8x8xf32> to vector<1x8xf32>
    %59 = vector.shape_cast %58 : vector<1x8xf32> to vector<1x8x1xf32>
    %60 = vector.broadcast %59 : vector<1x8x1xf32> to vector<1x8x8xf32>
    %61 = arith.subf %57, %60 : vector<1x8x8xf32>
    %62 = math.exp %61 : vector<1x8x8xf32>
    %cst_51 = arith.constant dense<0.000000e+00> : vector<1x8xf32>
    %63 = vector.multi_reduction <add>, %62, %cst_51 [2] : vector<1x8x8xf32> to vector<1x8xf32>
    %64 = vector.shape_cast %63 : vector<1x8xf32> to vector<1x8x1xf32>
    %65 = tpu.reciprocal %64 {approx = true} : vector<1x8x1xf32> -> vector<1x8x1xf32>
    %66 = vector.broadcast %65 : vector<1x8x1xf32> to vector<1x8x8xf32>
    %67 = arith.mulf %62, %66 : vector<1x8x8xf32>
    %c0_52 = arith.constant 0 : index
    %c2 = arith.constant 2 : index
    %c0_53 = arith.constant 0 : index
    %c0_54 = arith.constant 0 : index
    %68 = vector.load %arg5[%c0_52, %c2, %c0_53, %c0_54] : memref<1x4x8x8xf32, #tpu.memory_space<vmem>>, vector<1x1x8x8xf32>
    %69 = vector.shape_cast %68 : vector<1x1x8x8xf32> to vector<1x8x8xf32>
    %70 = vector.shape_cast %67 : vector<1x8x8xf32> to vector<1x1x8x8xf32>
    tpu.vector_store %arg5[%c0_52, %c2, %c0_53, %c0_54], %70 {strides = array<i32>} : memref<1x4x8x8xf32, #tpu.memory_space<vmem>>, vector<1x1x8x8xf32>,
    "tpu.trace_start"() <{level = 10 : i32, message = "bls,bsd->bld"}> : () -> ()
    %cst_55 = arith.constant dense<0.000000e+00> : vector<1x8x32xf32>
    %71 = tpu.matmul %67, %53, %cst_55 {dimension_numbers = #tpu.dot_dimension_numbers<[2], [1], [1], [2], [0, 0, 0, 1, 1, 2], [0], [0]>} : vector<1x8x8xf32>, vector<1x8x32xf32>, vector<1x8x32xf32> -> vector<1x8x32xf32>
    "tpu.trace_stop"() : () -> ()
    %c0_56 = arith.constant 0 : index
    %c0_57 = arith.constant 0 : index
    %c64_58 = arith.constant 64 : index
    %72 = vector.load %arg4[%c0_56, %c0_57, %c64_58] : memref<1x8x128xf32, #tpu.memory_space<vmem>>, vector<1x8x32xf32>
    tpu.vector_store %arg4[%c0_56, %c0_57, %c64_58], %71 {strides = array<i32>} : memref<1x8x128xf32, #tpu.memory_space<vmem>>, vector<1x8x32xf32>,
    %c0_59 = arith.constant 0 : index
    %c0_60 = arith.constant 0 : index
    %c96 = arith.constant 96 : index
    %73 = vector.load %arg1[%c0_59, %c0_60, %c96] : memref<1x8x128xf32, #tpu.memory_space<vmem>>, vector<1x8x32xf32>
    %c0_61 = arith.constant 0 : index
    %c0_62 = arith.constant 0 : index
    %c96_63 = arith.constant 96 : index
    %74 = vector.load %arg2[%c0_61, %c0_62, %c96_63] : memref<1x8x128xf32, #tpu.memory_space<vmem>>, vector<1x8x32xf32>
    %c0_64 = arith.constant 0 : index
    %c0_65 = arith.constant 0 : index
    %c96_66 = arith.constant 96 : index
    %75 = vector.load %arg3[%c0_64, %c0_65, %c96_66] : memref<1x8x128xf32, #tpu.memory_space<vmem>>, vector<1x8x32xf32>
    "tpu.trace_start"() <{level = 10 : i32, message = "ble,bse->bls"}> : () -> ()
    %cst_67 = arith.constant dense<0.000000e+00> : vector<1x8x8xf32>
    %76 = tpu.matmul %73, %74, %cst_67 {dimension_numbers = #tpu.dot_dimension_numbers<[2], [2], [1], [1], [0, 0, 0, 1, 1, 1], [0], [0]>} : vector<1x8x32xf32>, vector<1x8x32xf32>, vector<1x8x8xf32> -> vector<1x8x8xf32>
    "tpu.trace_stop"() : () -> ()
    %cst_68 = arith.constant 0.176776692 : f32
    %77 = vector.broadcast %cst_68 : f32 to vector<1x8x8xf32>
    %78 = arith.mulf %76, %77 : vector<1x8x8xf32>
    %79 = arith.addf %78, %6 : vector<1x8x8xf32>
    %cst_69 = arith.constant dense<0xFF800000> : vector<1x8xf32>
    %80 = vector.multi_reduction <maximumf>, %79, %cst_69 [2] : vector<1x8x8xf32> to vector<1x8xf32>
    %81 = vector.shape_cast %80 : vector<1x8xf32> to vector<1x8x1xf32>
    %82 = vector.broadcast %81 : vector<1x8x1xf32> to vector<1x8x8xf32>
    %83 = arith.subf %79, %82 : vector<1x8x8xf32>
    %84 = math.exp %83 : vector<1x8x8xf32>
    %cst_70 = arith.constant dense<0.000000e+00> : vector<1x8xf32>
    %85 = vector.multi_reduction <add>, %84, %cst_70 [2] : vector<1x8x8xf32> to vector<1x8xf32>
    %86 = vector.shape_cast %85 : vector<1x8xf32> to vector<1x8x1xf32>
    %87 = tpu.reciprocal %86 {approx = true} : vector<1x8x1xf32> -> vector<1x8x1xf32>
    %88 = vector.broadcast %87 : vector<1x8x1xf32> to vector<1x8x8xf32>
    %89 = arith.mulf %84, %88 : vector<1x8x8xf32>
    %c0_71 = arith.constant 0 : index
    %c3 = arith.constant 3 : index
    %c0_72 = arith.constant 0 : index
    %c0_73 = arith.constant 0 : index
    %90 = vector.load %arg5[%c0_71, %c3, %c0_72, %c0_73] : memref<1x4x8x8xf32, #tpu.memory_space<vmem>>, vector<1x1x8x8xf32>
    %91 = vector.shape_cast %90 : vector<1x1x8x8xf32> to vector<1x8x8xf32>
    %92 = vector.shape_cast %89 : vector<1x8x8xf32> to vector<1x1x8x8xf32>
    tpu.vector_store %arg5[%c0_71, %c3, %c0_72, %c0_73], %92 {strides = array<i32>} : memref<1x4x8x8xf32, #tpu.memory_space<vmem>>, vector<1x1x8x8xf32>,
    "tpu.trace_start"() <{level = 10 : i32, message = "bls,bsd->bld"}> : () -> ()
    %cst_74 = arith.constant dense<0.000000e+00> : vector<1x8x32xf32>
    %93 = tpu.matmul %89, %75, %cst_74 {dimension_numbers = #tpu.dot_dimension_numbers<[2], [1], [1], [2], [0, 0, 0, 1, 1, 2], [0], [0]>} : vector<1x8x8xf32>, vector<1x8x32xf32>, vector<1x8x32xf32> -> vector<1x8x32xf32>
    "tpu.trace_stop"() : () -> ()
    %c0_75 = arith.constant 0 : index
    %c0_76 = arith.constant 0 : index
    %c96_77 = arith.constant 96 : index
    %94 = vector.load %arg4[%c0_75, %c0_76, %c96_77] : memref<1x8x128xf32, #tpu.memory_space<vmem>>, vector<1x8x32xf32>
    tpu.vector_store %arg4[%c0_75, %c0_76, %c96_77], %93 {strides = array<i32>} : memref<1x8x128xf32, #tpu.memory_space<vmem>>, vector<1x8x32xf32>,
    return
  }
  func.func @transform_0(%arg0: i32) -> (i32, i32, i32) {
    %c0_i32 = arith.constant 0 : i32
    %c0_i32_0 = arith.constant 0 : i32
    %c0_i32_1 = arith.constant 0 : i32
    return %arg0, %c0_i32, %c0_i32_0 : i32, i32, i32
  }
  func.func @transform_1(%arg0: i32) -> (i32, i32, i32) {
    %c0_i32 = arith.constant 0 : i32
    %c0_i32_0 = arith.constant 0 : i32
    %c0_i32_1 = arith.constant 0 : i32
    return %arg0, %c0_i32, %c0_i32_0 : i32, i32, i32
  }
  func.func @transform_2(%arg0: i32) -> (i32, i32, i32) {
    %c0_i32 = arith.constant 0 : i32
    %c0_i32_0 = arith.constant 0 : i32
    %c0_i32_1 = arith.constant 0 : i32
    return %arg0, %c0_i32, %c0_i32_0 : i32, i32, i32
  }
  func.func @transform_3(%arg0: i32) -> (i32, i32, i32) {
    %c0_i32 = arith.constant 0 : i32
    %c0_i32_0 = arith.constant 0 : i32
    %c0_i32_1 = arith.constant 0 : i32
    return %arg0, %c0_i32, %c0_i32_0 : i32, i32, i32
  }
  func.func @transform_4(%arg0: i32) -> (i32, i32, i32, i32) {
    %c0_i32 = arith.constant 0 : i32
    %c0_i32_0 = arith.constant 0 : i32
    %c0_i32_1 = arith.constant 0 : i32
    %c0_i32_2 = arith.constant 0 : i32
    return %arg0, %c0_i32, %c0_i32_0, %c0_i32_1 : i32, i32, i32, i32
  }
}

</mosaic_0001>

<llo_original>
// kernel: tpu_custom_call.1
$region0: #{tpu_custom_call.1}
  #allocation0 [shape = 'u32[]', space=smem, size = 0x4, offset = 0x4, fixed_abs, tag = 'smem constant byte address 0x4 - core index']
  #allocation1 [shape = 'u32[144,128]{1,0:T(1,128)}', space=vmem, size = 0x12000, scoped, tag = 'internal scratch']
  %s0 = inlined_call_operand.hbm [shape: f32[2,8,128], index: 0, kind: input, shape index: {}]
  %s1 = inlined_call_operand.hbm [shape: f32[2,8,128], index: 1, kind: input, shape index: {}]
  %s2 = inlined_call_operand.hbm [shape: f32[2,8,128], index: 2, kind: input, shape index: {}]
  %s3 = inlined_call_operand.hbm [shape: f32[2,8,128], index: 3, kind: output, shape index: {0}]
  %s4 = inlined_call_operand.hbm [shape: f32[2,4,8,8], index: 4, kind: output, shape index: {1}]
  %5 = xla_tuple %s3, %s4
  %s6 = sld [smem:[#allocation0]]
  $region65: #{tpu_custom_call.1} parent=0
    _
  %s8 = ssub.s32 1, %s6
  %s9 = scalar_select 0, %s8, %s6
  $region1: #{tpu_custom_call.1} parent=0
    #allocation2 [shape = 'u8[8192]{0}', space=vmem, size = 0x2000, scoped, tag = 'input window, operand 0']
    #allocation3 [shape = 's32[2]{0}', space=sflag, size = 0x8, scoped, tag = 'scoped memory for tpu_custom_call.1']
    #allocation4 [shape = 's32[2]{0}', space=sflag, size = 0x8, scoped, tag = 'scoped memory for tpu_custom_call.1']
    #allocation5 [shape = 'u8[8192]{0}', space=vmem, size = 0x2000, scoped, tag = 'input window, operand 1']
    #allocation6 [shape = 's32[2]{0}', space=sflag, size = 0x8, scoped, tag = 'scoped memory for tpu_custom_call.1']
    #allocation7 [shape = 'u8[8192]{0}', space=vmem, size = 0x2000, scoped, tag = 'input window, operand 2']
    #allocation8 [shape = 'u8[8192]{0}', space=vmem, size = 0x2000, scoped, tag = 'output window, operand 0']
    #allocation9 [shape = 'u8[32768]{0}', space=vmem, size = 0x8000, scoped, tag = 'output window, operand 1']
    #allocation10 [shape = 's32[2]{0}', space=sflag, size = 0x8, scoped, tag = 'scoped memory for tpu_custom_call.1']
    %10 = vsyncpa [#allocation3], 0
    %s11 = scalar_lea.sflag [#allocation3], 1
    %12 = vsyncpa %s11, 0
    %13 = vsyncpa [#allocation6], 0
    %s14 = scalar_lea.sflag [#allocation6], 1
    %15 = vsyncpa %s14, 0
    %16 = vsyncpa [#allocation4], 0
    %s17 = scalar_lea.sflag [#allocation4], 1
    %18 = vsyncpa %s17, 0
    %19 = vsyncpa [#allocation10], 0
    %s20 = scalar_lea.sflag [#allocation10], 1
    %21 = vsyncpa %s20, 0
    loop: start=0, step=1, limit=4
    $region2: #{tpu_custom_call.1} parent=1 // loop_pre_header
      _
    $region3: #{tpu_custom_call.1} parent=1 // loop_header
      %s23 = sphi 0, %s27
      %p24 = scmp.ge.s32.totalorder %s23, 4
      %s33 = sphi 0, %s35
      %s36 = sphi 0, %s33
      %s37 = sphi 0, %s36
      %s53 = sphi 0, %s37
      %s59 = sphi 0, %s61
      %s62 = sphi 0, %s59
      %s63 = sphi 0, %s62
      %s79 = sphi 0, %s63
      %s85 = sphi 0, %s87
      %s88 = sphi 0, %s85
      %s89 = sphi 0, %s88
      %s105 = sphi 0, %s89
      %s111 = sphi 0, %s113
      %s114 = sphi 0, %s111
      %s115 = sphi 0, %s114
      %s131 = sphi 0, %s115
      %s137 = sphi 0, %s139
      %s140 = sphi 0, %s137
      %s141 = sphi 0, %s140
      %s157 = sphi 0, %s141
    $region4: #{tpu_custom_call.1} parent=1 // loop_header_branch
      %26 = sbr.rel (%p24) target = $region8
    $region5: #{tpu_custom_call.1} parent=1 // loop_body
      %s28 = ssub.s32 %s23, 1
      %s29 = ssub.s32 %s23, 2
      %s30 = sadd.s32 %s23, 1
      %s31 = ssub.s32 %s23, %s30
      %p32 = scmp.eq.s32.totalorder %s31, 0
      %s34 = sadd.s32 %s33, 1
      %s35 = scalar_select %p32, %s33, %s34
      %p38 = pneg %p32
      %p39 = scmp.eq.s32.totalorder %s23, 1
      %p40 = por %p38, %p39
      %p41 = scmp.ne.s32.totalorder %s33, %s36
      %p42 = scmp.eq.s32.totalorder %s23, 0
      %p43 = por %p41, %p42
      %p44 = scmp.ne.s32.totalorder %s33, %s36
      %p45 = scmp.eq.s32.totalorder %s28, 1
      %p46 = por %p44, %p45
      %p47 = scmp.ne.s32.totalorder %s36, %s37
      %p48 = scmp.eq.s32.totalorder %s28, 0
      %p49 = por %p47, %p48
      %p50 = scmp.ne.s32.totalorder %s36, %s37
      %p51 = scmp.eq.s32.totalorder %s29, 1
      %p52 = por %p50, %p51
      %p54 = scmp.ne.s32.totalorder %s37, %s53
      %p55 = scmp.eq.s32.totalorder %s29, 0
      %p56 = por %p54, %p55
      %s57 = ssub.s32 %s23, %s30
      %p58 = scmp.eq.s32.totalorder %s57, 0
      %s60 = sadd.s32 %s59, 1
      %s61 = scalar_select %p58, %s59, %s60
      %p64 = pneg %p58
      %p65 = scmp.eq.s32.totalorder %s23, 1
      %p66 = por %p64, %p65
      %p67 = scmp.ne.s32.totalorder %s59, %s62
      %p68 = scmp.eq.s32.totalorder %s23, 0
      %p69 = por %p67, %p68
      %p70 = scmp.ne.s32.totalorder %s59, %s62
      %p71 = scmp.eq.s32.totalorder %s28, 1
      %p72 = por %p70, %p71
      %p73 = scmp.ne.s32.totalorder %s62, %s63
      %p74 = scmp.eq.s32.totalorder %s28, 0
      %p75 = por %p73, %p74
      %p76 = scmp.ne.s32.totalorder %s62, %s63
      %p77 = scmp.eq.s32.totalorder %s29, 1
      %p78 = por %p76, %p77
      %p80 = scmp.ne.s32.totalorder %s63, %s79
      %p81 = scmp.eq.s32.totalorder %s29, 0
      %p82 = por %p80, %p81
      %s83 = ssub.s32 %s23, %s30
      %p84 = scmp.eq.s32.totalorder %s83, 0
      %s86 = sadd.s32 %s85, 1
      %s87 = scalar_select %p84, %s85, %s86
      %p90 = pneg %p84
      %p91 = scmp.eq.s32.totalorder %s23, 1
      %p92 = por %p90, %p91
      %p93 = scmp.ne.s32.totalorder %s85, %s88
      %p94 = scmp.eq.s32.totalorder %s23, 0
      %p95 = por %p93, %p94
      %p96 = scmp.ne.s32.totalorder %s85, %s88
      %p97 = scmp.eq.s32.totalorder %s28, 1
      %p98 = por %p96, %p97
      %p99 = scmp.ne.s32.totalorder %s88, %s89
      %p100 = scmp.eq.s32.totalorder %s28, 0
      %p101 = por %p99, %p100
      %p102 = scmp.ne.s32.totalorder %s88, %s89
      %p103 = scmp.eq.s32.totalorder %s29, 1
      %p104 = por %p102, %p103
      %p106 = scmp.ne.s32.totalorder %s89, %s105
      %p107 = scmp.eq.s32.totalorder %s29, 0
      %p108 = por %p106, %p107
      %s109 = ssub.s32 %s23, %s30
      %p110 = scmp.eq.s32.totalorder %s109, 0
      %s112 = sadd.s32 %s111, 1
      %s113 = scalar_select %p110, %s111, %s112
      %p116 = pneg %p110
      %p117 = scmp.eq.s32.totalorder %s23, 1
      %p118 = por %p116, %p117
      %p119 = scmp.ne.s32.totalorder %s111, %s114
      %p120 = scmp.eq.s32.totalorder %s23, 0
      %p121 = por %p119, %p120
      %p122 = scmp.ne.s32.totalorder %s111, %s114
      %p123 = scmp.eq.s32.totalorder %s28, 1
      %p124 = por %p122, %p123
      %p125 = scmp.ne.s32.totalorder %s114, %s115
      %p126 = scmp.eq.s32.totalorder %s28, 0
      %p127 = por %p125, %p126
      %p128 = scmp.ne.s32.totalorder %s114, %s115
      %p129 = scmp.eq.s32.totalorder %s29, 1
      %p130 = por %p128, %p129
      %p132 = scmp.ne.s32.totalorder %s115, %s131
      %p133 = scmp.eq.s32.totalorder %s29, 0
      %p134 = por %p132, %p133
      %s135 = ssub.s32 %s23, %s30
      %p136 = scmp.eq.s32.totalorder %s135, 0
      %s138 = sadd.s32 %s137, 1
      %s139 = scalar_select %p136, %s137, %s138
      %p142 = pneg %p136
      %p143 = scmp.eq.s32.totalorder %s23, 1
      %p144 = por %p142, %p143
      %p145 = scmp.ne.s32.totalorder %s137, %s140
      %p146 = scmp.eq.s32.totalorder %s23, 0
      %p147 = por %p145, %p146
      %p148 = scmp.ne.s32.totalorder %s137, %s140
      %p149 = scmp.eq.s32.totalorder %s28, 1
      %p150 = por %p148, %p149
      %p151 = scmp.ne.s32.totalorder %s140, %s141
      %p152 = scmp.eq.s32.totalorder %s28, 0
      %p153 = por %p151, %p152
      %p154 = scmp.ne.s32.totalorder %s140, %s141
      %p155 = scmp.eq.s32.totalorder %s29, 1
      %p156 = por %p154, %p155
      %p158 = scmp.ne.s32.totalorder %s141, %s157
      %p159 = scmp.eq.s32.totalorder %s29, 0
      %p160 = por %p158, %p159
      %p161 = scmp.le.s32.totalorder 1, %s23
      %p162 = scmp.lt.s32.totalorder %s23, 3
      %p163 = pnand %p161, %p162
      %p164 = pneg %p163
      // Predicated region
      $region9: #{tpu_custom_call.1} parent=5 // pred_check
        _
      $region10: #{tpu_custom_call.1} parent=5 // pred_check_branch
        %166 = sbr.rel (%p163) target = $region12
      $region11: #{tpu_custom_call.1} parent=5 // pred_region
        %s167 = ssub.s32 %s23, 1
      $region12: #{tpu_custom_call.1} parent=5 // pred_fallthru
        _
      %p168 = scmp.lt.s32.totalorder %s23, 2
      // Predicated region
      $region13: #{tpu_custom_call.1} parent=5 // pred_check
        %p169 = pneg %p168
      $region14: #{tpu_custom_call.1} parent=5 // pred_check_branch
        %171 = sbr.rel (%p169) target = $region16
      $region15: #{tpu_custom_call.1} parent=5 // pred_region
        // Predicated region
        $region17: #{tpu_custom_call.1} parent=15 // pred_check
          %p172 = pneg %p43
        $region18: #{tpu_custom_call.1} parent=15 // pred_check_branch
          %174 = sbr.rel (%p172) target = $region20
        $region19: #{tpu_custom_call.1} parent=15 // pred_region
          %s175 = sand.u32 %s33, 1
          %s176 = scalar_lea.sflag [#allocation3], %s175
          %s177 = sand.u32 %s33, 1
          %s178 = smul.addr %s177, 8
          %s179 = scalar_lea.vmem [#allocation2], %s178
          %s181 = ssub.s32 128, 128
          %182 = vsyncadd %s176, %s181
          %s183 = smul.addr %s23, 128
          %s184 = scalar_lea.hbm %s0, %s183
          %s186 = sshll.u32 %s179, 4
          %s187 = int_to_ptr.vmem [resolvable:$true] %s186
          %189 = dma.hbm_to_vmem [thread:$0]  %s184, 128, %s187, %s176
        $region20: #{tpu_custom_call.1} parent=15 // pred_fallthru
          _
        // Predicated region
        $region21: #{tpu_custom_call.1} parent=15 // pred_check
          %p190 = pneg %p69
        $region22: #{tpu_custom_call.1} parent=15 // pred_check_branch
          %192 = sbr.rel (%p190) target = $region24
        $region23: #{tpu_custom_call.1} parent=15 // pred_region
          %s193 = sand.u32 %s23, 1
          %s194 = scalar_lea.sflag [#allocation6], %s193
          %s195 = sand.u32 %s59, 1
          %s196 = smul.addr %s195, 8
          %s197 = scalar_lea.vmem [#allocation5], %s196
          %s199 = ssub.s32 128, 128
          %200 = vsyncadd %s194, %s199
          %s201 = smul.addr %s23, 128
          %s202 = scalar_lea.hbm %s1, %s201
          %s204 = sshll.u32 %s197, 4
          %s205 = int_to_ptr.vmem [resolvable:$true] %s204
          %207 = dma.hbm_to_vmem [thread:$0]  %s202, 128, %s205, %s194
        $region24: #{tpu_custom_call.1} parent=15 // pred_fallthru
          _
        // Predicated region
        $region25: #{tpu_custom_call.1} parent=15 // pred_check
          %p208 = pneg %p95
        $region26: #{tpu_custom_call.1} parent=15 // pred_check_branch
          %210 = sbr.rel (%p208) target = $region28
        $region27: #{tpu_custom_call.1} parent=15 // pred_region
          %s211 = sand.u32 %s23, 1
          %s212 = scalar_lea.sflag [#allocation6], %s211
          %s213 = sand.u32 %s85, 1
          %s214 = smul.addr %s213, 8
          %s215 = scalar_lea.vmem [#allocation7], %s214
          %s217 = ssub.s32 128, 128
          %218 = vsyncadd %s212, %s217
          %s219 = smul.addr %s23, 128
          %s220 = scalar_lea.hbm %s2, %s219
          %s222 = sshll.u32 %s215, 4
          %s223 = int_to_ptr.vmem [resolvable:$true] %s222
          %225 = dma.hbm_to_vmem [thread:$0]  %s220, 128, %s223, %s212
        $region28: #{tpu_custom_call.1} parent=15 // pred_fallthru
          _
      $region16: #{tpu_custom_call.1} parent=5 // pred_fallthru
        _
      %p226 = scmp.le.s32.totalorder 1, %s23
      %p227 = scmp.lt.s32.totalorder %s23, 3
      %p228 = pnand %p226, %p227
      %p229 = pneg %p228
      // Predicated region
      $region29: #{tpu_custom_call.1} parent=5 // pred_check
        _
      $region30: #{tpu_custom_call.1} parent=5 // pred_check_branch
        %231 = sbr.rel (%p228) target = $region32
      $region31: #{tpu_custom_call.1} parent=5 // pred_region
        %s232 = ssub.s32 %s23, 1
        %s233 = sand.u32 %s36, 1
        %s234 = scalar_lea.sflag [#allocation3], %s233
        %s235 = sand.u32 %s36, 1
        %s236 = smul.addr %s235, 8
        %s237 = scalar_lea.vmem [#allocation2], %s236
        // Predicated region
        $region33: #{tpu_custom_call.1} parent=31 // pred_check
          %p238 = pneg %p49
        $region34: #{tpu_custom_call.1} parent=31 // pred_check_branch
          %240 = sbr.rel (%p238) target = $region36
        $region35: #{tpu_custom_call.1} parent=31 // pred_region
          %241 = dma.done %s234, 128
        $region36: #{tpu_custom_call.1} parent=31 // pred_fallthru
          _
        %s242 = sand.u32 %s28, 1
        %s243 = scalar_lea.sflag [#allocation6], %s242
        %s244 = sand.u32 %s62, 1
        %s245 = smul.addr %s244, 8
        %s246 = scalar_lea.vmem [#allocation5], %s245
        // Predicated region
        $region37: #{tpu_custom_call.1} parent=31 // pred_check
          %p247 = pneg %p75
        $region38: #{tpu_custom_call.1} parent=31 // pred_check_branch
          %249 = sbr.rel (%p247) target = $region40
        $region39: #{tpu_custom_call.1} parent=31 // pred_region
          %250 = dma.done %s243, 128
        $region40: #{tpu_custom_call.1} parent=31 // pred_fallthru
          _
        %s251 = sand.u32 %s28, 1
        %s252 = scalar_lea.sflag [#allocation6], %s251
        %s253 = sand.u32 %s88, 1
        %s254 = smul.addr %s253, 8
        %s255 = scalar_lea.vmem [#allocation7], %s254
        // Predicated region
        $region41: #{tpu_custom_call.1} parent=31 // pred_check
          %p256 = pneg %p101
        $region42: #{tpu_custom_call.1} parent=31 // pred_check_branch
          %258 = sbr.rel (%p256) target = $region44
        $region43: #{tpu_custom_call.1} parent=31 // pred_region
          %259 = dma.done %s252, 128
        $region44: #{tpu_custom_call.1} parent=31 // pred_fallthru
          _
        %s260 = sand.u32 %s36, 1
        %s261 = scalar_lea.sflag [#allocation3], %s260
        %s262 = sand.u32 %s36, 1
        %s263 = smul.addr %s262, 8
        %s264 = scalar_lea.vmem [#allocation2], %s263
        %p265 = pneg %p49
        %p266 = pneg %p46
        %s267 = sand.u32 %s28, 1
        %s268 = scalar_lea.sflag [#allocation6], %s267
        %s269 = sand.u32 %s62, 1
        %s270 = smul.addr %s269, 8
        %s271 = scalar_lea.vmem [#allocation5], %s270
        %p272 = pneg %p75
        %p273 = pneg %p72
        %s274 = sand.u32 %s28, 1
        %s275 = scalar_lea.sflag [#allocation6], %s274
        %s276 = sand.u32 %s88, 1
        %s277 = smul.addr %s276, 8
        %s278 = scalar_lea.vmem [#allocation7], %s277
        %p279 = pneg %p101
        %p280 = pneg %p98
        %p281 = pneg %p127
        %p282 = pneg %p124
        %s283 = sand.u32 %s114, 1
        %s284 = scalar_lea.sflag [#allocation4], %s283
        %s285 = sand.u32 %s114, 1
        %s286 = smul.addr %s285, 8
        %s287 = scalar_lea.vmem [#allocation8], %s286
        %p288 = pneg %p153
        %p289 = pneg %p150
        %s290 = sand.u32 %s140, 1
        %s291 = scalar_lea.sflag [#allocation10], %s290
        %s292 = sand.u32 %s140, 1
        %s293 = smul.addr %s292, 32
        %s294 = scalar_lea.vmem [#allocation9], %s293
        %v295 = vlaneseq
        %v296 = vshrl.u32 %v295, 7
        %v297 = vlaneseq
        %v298 = vand.u32 %v297, 127
        %vm299 = vcmp.gt.s32.totalorder %v298, %v296
        %v300 = vsel %vm299, -inf, 0.0
        %v301 = vld [vmem:[%s237] sm:$0xff]
        %v302 = vld [vmem:[%s246] sm:$0xff]
        %v303 = vld [vmem:[%s255] sm:$0xff]
        %vm304 = vcmask 261120
        %v306 = vsel %vm304, %v301, 0
        %v309 = vsel %vm304, %v302, 0
        %311 = vmatprep.subr.mxu0 0.0
        %312 = vmatpush1.xpose.msra.mxu0 %v309
        %313 = vmatprep.subr.mxu0 0.0
        %314 = vmatpush1.xpose.msra.mxu0 0.0
        %315 = vmatprep.subr.mxu0 0.0
        %316 = vmatpush1.xpose.msra.mxu0 0.0
        %317 = vmatprep.subr.mxu0 0.0
        %318 = vmatpush1.xpose.msra.mxu0 0.0
        %319 = vmatprep.subr.mxu0 0.0
        %320 = vmatpush1.xpose.msra.mxu0 0.0
        %321 = vmatprep.subr.mxu0 0.0
        %322 = vmatpush1.xpose.msra.mxu0 0.0
        %323 = vmatprep.subr.mxu0 0.0
        %324 = vmatpush1.xpose.msra.mxu0 0.0
        %325 = vmatprep.subr.mxu0 0.0
        %326 = vmatpush1.xpose.msra.mxu0 0.0
        %327 = vmatprep.subr.mxu0 0.0
        %328 = vmatpush1.xpose.msra.mxu0 0.0
        %329 = vmatprep.subr.mxu0 0.0
        %330 = vmatpush1.xpose.msra.mxu0 0.0
        %331 = vmatprep.subr.mxu0 0.0
        %332 = vmatpush1.xpose.msra.mxu0 0.0
        %333 = vmatprep.subr.mxu0 0.0
        %334 = vmatpush1.xpose.msra.mxu0 0.0
        %335 = vmatprep.subr.mxu0 0.0
        %336 = vmatpush1.xpose.msra.mxu0 0.0
        %337 = vmatprep.subr.mxu0 0.0
        %338 = vmatpush1.xpose.msra.mxu0 0.0
        %339 = vmatprep.subr.mxu0 0.0
        %340 = vmatpush1.xpose.msra.mxu0 0.0
        %341 = vmatprep.subr.mxu0 0.0
        %342 = vmatpush1.xpose.msra.mxu0 0.0
        %343 = vmatprep.subr.mxu0 0.0
        %344 = vmatpush1.xpose.msra.mxu0 0.0
        %345 = vmatprep.subr.mxu0 0.0
        %346 = vmatpush1.xpose.msra.mxu0 0.0
        %347 = vmatprep.subr.mxu0 0.0
        %348 = vmatpush1.xpose.msra.mxu0 0.0
        %349 = vmatprep.subr.mxu0 0.0
        %350 = vmatpush1.xpose.msra.mxu0 0.0
        %351 = vmatprep.subr.mxu0 0.0
        %352 = vmatpush1.xpose.msra.mxu0 0.0
        %353 = vmatprep.subr.mxu0 0.0
        %354 = vmatpush1.xpose.msra.mxu0 0.0
        %355 = vmatprep.subr.mxu0 0.0
        %356 = vmatpush1.xpose.msra.mxu0 0.0
        %357 = vmatprep.subr.mxu0 0.0
        %358 = vmatpush1.xpose.msra.mxu0 0.0
        %359 = vmatprep.subr.mxu0 0.0
        %360 = vmatpush1.xpose.msra.mxu0 0.0
        %361 = vmatprep.subr.mxu0 0.0
        %362 = vmatpush1.xpose.msra.mxu0 0.0
        %363 = vmatprep.subr.mxu0 0.0
        %364 = vmatpush1.xpose.msra.mxu0 0.0
        %365 = vmatprep.subr.mxu0 0.0
        %366 = vmatpush1.xpose.msra.mxu0 0.0
        %367 = vmatprep.subr.mxu0 0.0
        %368 = vmatpush1.xpose.msra.mxu0 0.0
        %369 = vmatprep.subr.mxu0 0.0
        %370 = vmatpush1.xpose.msra.mxu0 0.0
        %371 = vmatprep.subr.mxu0 0.0
        %372 = vmatpush1.xpose.msra.mxu0 0.0
        %373 = vmatprep.subr.mxu0 0.0
        %374 = vmatpush1.xpose.msra.mxu0 0.0
        %375 = vmatprep.mubr.f32.mxu0 0.0
        %376 = vmatmul.mubr.f32.gmra.mrb[0].mxu0 %v306
        %v377 = vpop.f32.mrb[0].mxu0
        %v378 = vadd.f32 0.0, %v377
        %v379 = vpop.f32.mrb[0].mxu0
        %380 = vdwg.mxu0
        %v381 = vmul.f32 %v378, 0.17677669
        %v382 = vadd.f32 %v381, %v300
        %vm383 = vcmask 64512
        %v384 = vsel %vm383, %v382, -inf
        %385 = vmax.xlane.f32.xlu0 %v384
        %v386 = vpop.xlane.xlu0 %385
        %v387 = vsub.f32 %v382, %v386
        %v388 = vmul.f32 %v387, 1.442695
        %v389 = vpow.pop %v388
        %v390 = vsel %vm383, %v389, 0.0
        %391 = vadd.xlane.f32.xlu0 %v390
        %v392 = vpop.xlane.xlu0 %391
        %v393 = vrcp.pop %v392
        %v394 = vmul.f32 %v389, %v393
        %395 = vst.msk [vmem:[%s294] sm:$0xff] %vm383, %v394
        %v397 = vsel %vm383, %v394, 0
        %399 = vmatprep.subr.mxu0 0.0
        %400 = vmatpush1.msra.mxu0 %v303
        %401 = vmatprep.subr.mxu0 0.0
        %402 = vmatpush1.msra.mxu0 0.0
        %403 = vmatprep.subr.mxu0 0.0
        %404 = vmatpush1.msra.mxu0 0.0
        %405 = vmatprep.subr.mxu0 0.0
        %406 = vmatpush1.msra.mxu0 0.0
        %407 = vmatprep.subr.mxu0 0.0
        %408 = vmatpush1.msra.mxu0 0.0
        %409 = vmatprep.subr.mxu0 0.0
        %410 = vmatpush1.msra.mxu0 0.0
        %411 = vmatprep.subr.mxu0 0.0
        %412 = vmatpush1.msra.mxu0 0.0
        %413 = vmatprep.subr.mxu0 0.0
        %414 = vmatpush1.msra.mxu0 0.0
        %415 = vmatprep.subr.mxu0 0.0
        %416 = vmatpush1.msra.mxu0 0.0
        %417 = vmatprep.subr.mxu0 0.0
        %418 = vmatpush1.msra.mxu0 0.0
        %419 = vmatprep.subr.mxu0 0.0
        %420 = vmatpush1.msra.mxu0 0.0
        %421 = vmatprep.subr.mxu0 0.0
        %422 = vmatpush1.msra.mxu0 0.0
        %423 = vmatprep.subr.mxu0 0.0
        %424 = vmatpush1.msra.mxu0 0.0
        %425 = vmatprep.subr.mxu0 0.0
        %426 = vmatpush1.msra.mxu0 0.0
        %427 = vmatprep.subr.mxu0 0.0
        %428 = vmatpush1.msra.mxu0 0.0
        %429 = vmatprep.subr.mxu0 0.0
        %430 = vmatpush1.msra.mxu0 0.0
        %431 = vmatprep.subr.mxu0 0.0
        %432 = vmatpush1.msra.mxu0 0.0
        %433 = vmatprep.subr.mxu0 0.0
        %434 = vmatpush1.msra.mxu0 0.0
        %435 = vmatprep.subr.mxu0 0.0
        %436 = vmatpush1.msra.mxu0 0.0
        %437 = vmatprep.subr.mxu0 0.0
        %438 = vmatpush1.msra.mxu0 0.0
        %439 = vmatprep.subr.mxu0 0.0
        %440 = vmatpush1.msra.mxu0 0.0
        %441 = vmatprep.subr.mxu0 0.0
        %442 = vmatpush1.msra.mxu0 0.0
        %443 = vmatprep.subr.mxu0 0.0
        %444 = vmatpush1.msra.mxu0 0.0
        %445 = vmatprep.subr.mxu0 0.0
        %446 = vmatpush1.msra.mxu0 0.0
        %447 = vmatprep.subr.mxu0 0.0
        %448 = vmatpush1.msra.mxu0 0.0
        %449 = vmatprep.subr.mxu0 0.0
        %450 = vmatpush1.msra.mxu0 0.0
        %451 = vmatprep.subr.mxu0 0.0
        %452 = vmatpush1.msra.mxu0 0.0
        %453 = vmatprep.subr.mxu0 0.0
        %454 = vmatpush1.msra.mxu0 0.0
        %455 = vmatprep.subr.mxu0 0.0
        %456 = vmatpush1.msra.mxu0 0.0
        %457 = vmatprep.subr.mxu0 0.0
        %458 = vmatpush1.msra.mxu0 0.0
        %459 = vmatprep.subr.mxu0 0.0
        %460 = vmatpush1.msra.mxu0 0.0
        %461 = vmatprep.subr.mxu0 0.0
        %462 = vmatpush1.msra.mxu0 0.0
        %463 = vmatprep.mubr.f32.mxu0 0.0
        %464 = vmatmul.mubr.f32.gmra.mrb[0].mxu0 %v397
        %v465 = vpop.f32.mrb[0].mxu0
        %v466 = vadd.f32 0.0, %v465
        %v467 = vpop.f32.mrb[0].mxu0
        %468 = vdwg.mxu0
        %469 = vst.msk [vmem:[%s287] sm:$0xff] %vm304, %v466
        %v470 = vld [vmem:[%s237] sm:$0xff]
        %v471 = vld [vmem:[%s246] sm:$0xff]
        %v472 = vld [vmem:[%s255] sm:$0xff]
        %474 = vrot.lane.b32.xlu0 %v470, 96
        %v475 = vpop.permute.xlu0 %474
        %477 = vrot.lane.b32.xlu0 %v471, 96
        %v478 = vpop.permute.xlu0 %477
        %v479 = vsel %vm304, %v475, 0
        %v481 = vsel %vm304, %v478, 0
        %483 = vmatprep.subr.mxu0 0.0
        %484 = vmatpush1.xpose.msra.mxu0 %v481
        %485 = vmatprep.subr.mxu0 0.0
        %486 = vmatpush1.xpose.msra.mxu0 0.0
        %487 = vmatprep.subr.mxu0 0.0
        %488 = vmatpush1.xpose.msra.mxu0 0.0
        %489 = vmatprep.subr.mxu0 0.0
        %490 = vmatpush1.xpose.msra.mxu0 0.0
        %491 = vmatprep.subr.mxu0 0.0
        %492 = vmatpush1.xpose.msra.mxu0 0.0
        %493 = vmatprep.subr.mxu0 0.0
        %494 = vmatpush1.xpose.msra.mxu0 0.0
        %495 = vmatprep.subr.mxu0 0.0
        %496 = vmatpush1.xpose.msra.mxu0 0.0
        %497 = vmatprep.subr.mxu0 0.0
        %498 = vmatpush1.xpose.msra.mxu0 0.0
        %499 = vmatprep.subr.mxu0 0.0
        %500 = vmatpush1.xpose.msra.mxu0 0.0
        %501 = vmatprep.subr.mxu0 0.0
        %502 = vmatpush1.xpose.msra.mxu0 0.0
        %503 = vmatprep.subr.mxu0 0.0
        %504 = vmatpush1.xpose.msra.mxu0 0.0
        %505 = vmatprep.subr.mxu0 0.0
        %506 = vmatpush1.xpose.msra.mxu0 0.0
        %507 = vmatprep.subr.mxu0 0.0
        %508 = vmatpush1.xpose.msra.mxu0 0.0
        %509 = vmatprep.subr.mxu0 0.0
        %510 = vmatpush1.xpose.msra.mxu0 0.0
        %511 = vmatprep.subr.mxu0 0.0
        %512 = vmatpush1.xpose.msra.mxu0 0.0
        %513 = vmatprep.subr.mxu0 0.0
        %514 = vmatpush1.xpose.msra.mxu0 0.0
        %515 = vmatprep.subr.mxu0 0.0
        %516 = vmatpush1.xpose.msra.mxu0 0.0
        %517 = vmatprep.subr.mxu0 0.0
        %518 = vmatpush1.xpose.msra.mxu0 0.0
        %519 = vmatprep.subr.mxu0 0.0
        %520 = vmatpush1.xpose.msra.mxu0 0.0
        %521 = vmatprep.subr.mxu0 0.0
        %522 = vmatpush1.xpose.msra.mxu0 0.0
        %523 = vmatprep.subr.mxu0 0.0
        %524 = vmatpush1.xpose.msra.mxu0 0.0
        %525 = vmatprep.subr.mxu0 0.0
        %526 = vmatpush1.xpose.msra.mxu0 0.0
        %527 = vmatprep.subr.mxu0 0.0
        %528 = vmatpush1.xpose.msra.mxu0 0.0
        %529 = vmatprep.subr.mxu0 0.0
        %530 = vmatpush1.xpose.msra.mxu0 0.0
        %531 = vmatprep.subr.mxu0 0.0
        %532 = vmatpush1.xpose.msra.mxu0 0.0
        %533 = vmatprep.subr.mxu0 0.0
        %534 = vmatpush1.xpose.msra.mxu0 0.0
        %535 = vmatprep.subr.mxu0 0.0
        %536 = vmatpush1.xpose.msra.mxu0 0.0
        %537 = vmatprep.subr.mxu0 0.0
        %538 = vmatpush1.xpose.msra.mxu0 0.0
        %539 = vmatprep.subr.mxu0 0.0
        %540 = vmatpush1.xpose.msra.mxu0 0.0
        %541 = vmatprep.subr.mxu0 0.0
        %542 = vmatpush1.xpose.msra.mxu0 0.0
        %543 = vmatprep.subr.mxu0 0.0
        %544 = vmatpush1.xpose.msra.mxu0 0.0
        %545 = vmatprep.subr.mxu0 0.0
        %546 = vmatpush1.xpose.msra.mxu0 0.0
        %547 = vmatprep.mubr.f32.mxu0 0.0
        %548 = vmatmul.mubr.f32.gmra.mrb[0].mxu0 %v479
        %v549 = vpop.f32.mrb[0].mxu0
        %v550 = vadd.f32 0.0, %v549
        %v551 = vpop.f32.mrb[0].mxu0
        %552 = vdwg.mxu0
        %v553 = vmul.f32 %v550, 0.17677669
        %v554 = vadd.f32 %v553, %v300
        %v555 = vsel %vm383, %v554, -inf
        %556 = vmax.xlane.f32.xlu0 %v555
        %v557 = vpop.xlane.xlu0 %556
        %v558 = vsub.f32 %v554, %v557
        %v559 = vmul.f32 %v558, 1.442695
        %v560 = vpow.pop %v559
        %v561 = vsel %vm383, %v560, 0.0
        %562 = vadd.xlane.f32.xlu0 %v561
        %v563 = vpop.xlane.xlu0 %562
        %v564 = vrcp.pop %v563
        %v565 = vmul.f32 %v560, %v564
        %s566 = scalar_lea.vmem %s294, 8 [#allocation9]
        %567 = vst.msk [vmem:[%s566] sm:$0xff] %vm383, %v565
        %569 = vrot.lane.b32.xlu0 %v472, 96
        %v570 = vpop.permute.xlu0 %569
        %v573 = vsel %vm383, %v565, 0
        %575 = vmatprep.subr.mxu0 0.0
        %576 = vmatpush1.msra.mxu0 %v570
        %577 = vmatprep.subr.mxu0 0.0
        %578 = vmatpush1.msra.mxu0 0.0
        %579 = vmatprep.subr.mxu0 0.0
        %580 = vmatpush1.msra.mxu0 0.0
        %581 = vmatprep.subr.mxu0 0.0
        %582 = vmatpush1.msra.mxu0 0.0
        %583 = vmatprep.subr.mxu0 0.0
        %584 = vmatpush1.msra.mxu0 0.0
        %585 = vmatprep.subr.mxu0 0.0
        %586 = vmatpush1.msra.mxu0 0.0
        %587 = vmatprep.subr.mxu0 0.0
        %588 = vmatpush1.msra.mxu0 0.0
        %589 = vmatprep.subr.mxu0 0.0
        %590 = vmatpush1.msra.mxu0 0.0
        %591 = vmatprep.subr.mxu0 0.0
        %592 = vmatpush1.msra.mxu0 0.0
        %593 = vmatprep.subr.mxu0 0.0
        %594 = vmatpush1.msra.mxu0 0.0
        %595 = vmatprep.subr.mxu0 0.0
        %596 = vmatpush1.msra.mxu0 0.0
        %597 = vmatprep.subr.mxu0 0.0
        %598 = vmatpush1.msra.mxu0 0.0
        %599 = vmatprep.subr.mxu0 0.0
        %600 = vmatpush1.msra.mxu0 0.0
        %601 = vmatprep.subr.mxu0 0.0
        %602 = vmatpush1.msra.mxu0 0.0
        %603 = vmatprep.subr.mxu0 0.0
        %604 = vmatpush1.msra.mxu0 0.0
        %605 = vmatprep.subr.mxu0 0.0
        %606 = vmatpush1.msra.mxu0 0.0
        %607 = vmatprep.subr.mxu0 0.0
        %608 = vmatpush1.msra.mxu0 0.0
        %609 = vmatprep.subr.mxu0 0.0
        %610 = vmatpush1.msra.mxu0 0.0
        %611 = vmatprep.subr.mxu0 0.0
        %612 = vmatpush1.msra.mxu0 0.0
        %613 = vmatprep.subr.mxu0 0.0
        %614 = vmatpush1.msra.mxu0 0.0
        %615 = vmatprep.subr.mxu0 0.0
        %616 = vmatpush1.msra.mxu0 0.0
        %617 = vmatprep.subr.mxu0 0.0
        %618 = vmatpush1.msra.mxu0 0.0
        %619 = vmatprep.subr.mxu0 0.0
        %620 = vmatpush1.msra.mxu0 0.0
        %621 = vmatprep.subr.mxu0 0.0
        %622 = vmatpush1.msra.mxu0 0.0
        %623 = vmatprep.subr.mxu0 0.0
        %624 = vmatpush1.msra.mxu0 0.0
        %625 = vmatprep.subr.mxu0 0.0
        %626 = vmatpush1.msra.mxu0 0.0
        %627 = vmatprep.subr.mxu0 0.0
        %628 = vmatpush1.msra.mxu0 0.0
        %629 = vmatprep.subr.mxu0 0.0
        %630 = vmatpush1.msra.mxu0 0.0
        %631 = vmatprep.subr.mxu0 0.0
        %632 = vmatpush1.msra.mxu0 0.0
        %633 = vmatprep.subr.mxu0 0.0
        %634 = vmatpush1.msra.mxu0 0.0
        %635 = vmatprep.subr.mxu0 0.0
        %636 = vmatpush1.msra.mxu0 0.0
        %637 = vmatprep.subr.mxu0 0.0
        %638 = vmatpush1.msra.mxu0 0.0
        %639 = vmatprep.mubr.f32.mxu0 0.0
        %640 = vmatmul.mubr.f32.gmra.mrb[0].mxu0 %v573
        %v641 = vpop.f32.mrb[0].mxu0
        %v642 = vadd.f32 0.0, %v641
        %v643 = vpop.f32.mrb[0].mxu0
        %644 = vdwg.mxu0
        %646 = vrot.lane.b32.xlu0 %v642, 32
        %v647 = vpop.permute.xlu0 %646
        %vm649 = vcmask 523520
        %650 = vst.msk [vmem:[%s287] sm:$0xff] %vm649, %v647
        %v651 = vld [vmem:[%s237] sm:$0xff]
        %v652 = vld [vmem:[%s246] sm:$0xff]
        %v653 = vld [vmem:[%s255] sm:$0xff]
        %655 = vrot.lane.b32.xlu0 %v651, 64
        %v656 = vpop.permute.xlu0 %655
        %658 = vrot.lane.b32.xlu0 %v652, 64
        %v659 = vpop.permute.xlu0 %658
        %v660 = vsel %vm304, %v656, 0
        %v662 = vsel %vm304, %v659, 0
        %664 = vmatprep.subr.mxu0 0.0
        %665 = vmatpush1.xpose.msra.mxu0 %v662
        %666 = vmatprep.subr.mxu0 0.0
        %667 = vmatpush1.xpose.msra.mxu0 0.0
        %668 = vmatprep.subr.mxu0 0.0
        %669 = vmatpush1.xpose.msra.mxu0 0.0
        %670 = vmatprep.subr.mxu0 0.0
        %671 = vmatpush1.xpose.msra.mxu0 0.0
        %672 = vmatprep.subr.mxu0 0.0
        %673 = vmatpush1.xpose.msra.mxu0 0.0
        %674 = vmatprep.subr.mxu0 0.0
        %675 = vmatpush1.xpose.msra.mxu0 0.0
        %676 = vmatprep.subr.mxu0 0.0
        %677 = vmatpush1.xpose.msra.mxu0 0.0
        %678 = vmatprep.subr.mxu0 0.0
        %679 = vmatpush1.xpose.msra.mxu0 0.0
        %680 = vmatprep.subr.mxu0 0.0
        %681 = vmatpush1.xpose.msra.mxu0 0.0
        %682 = vmatprep.subr.mxu0 0.0
        %683 = vmatpush1.xpose.msra.mxu0 0.0
        %684 = vmatprep.subr.mxu0 0.0
        %685 = vmatpush1.xpose.msra.mxu0 0.0
        %686 = vmatprep.subr.mxu0 0.0
        %687 = vmatpush1.xpose.msra.mxu0 0.0
        %688 = vmatprep.subr.mxu0 0.0
        %689 = vmatpush1.xpose.msra.mxu0 0.0
        %690 = vmatprep.subr.mxu0 0.0
        %691 = vmatpush1.xpose.msra.mxu0 0.0
        %692 = vmatprep.subr.mxu0 0.0
        %693 = vmatpush1.xpose.msra.mxu0 0.0
        %694 = vmatprep.subr.mxu0 0.0
        %695 = vmatpush1.xpose.msra.mxu0 0.0
        %696 = vmatprep.subr.mxu0 0.0
        %697 = vmatpush1.xpose.msra.mxu0 0.0
        %698 = vmatprep.subr.mxu0 0.0
        %699 = vmatpush1.xpose.msra.mxu0 0.0
        %700 = vmatprep.subr.mxu0 0.0
        %701 = vmatpush1.xpose.msra.mxu0 0.0
        %702 = vmatprep.subr.mxu0 0.0
        %703 = vmatpush1.xpose.msra.mxu0 0.0
        %704 = vmatprep.subr.mxu0 0.0
        %705 = vmatpush1.xpose.msra.mxu0 0.0
        %706 = vmatprep.subr.mxu0 0.0
        %707 = vmatpush1.xpose.msra.mxu0 0.0
        %708 = vmatprep.subr.mxu0 0.0
        %709 = vmatpush1.xpose.msra.mxu0 0.0
        %710 = vmatprep.subr.mxu0 0.0
        %711 = vmatpush1.xpose.msra.mxu0 0.0
        %712 = vmatprep.subr.mxu0 0.0
        %713 = vmatpush1.xpose.msra.mxu0 0.0
        %714 = vmatprep.subr.mxu0 0.0
        %715 = vmatpush1.xpose.msra.mxu0 0.0
        %716 = vmatprep.subr.mxu0 0.0
        %717 = vmatpush1.xpose.msra.mxu0 0.0
        %718 = vmatprep.subr.mxu0 0.0
        %719 = vmatpush1.xpose.msra.mxu0 0.0
        %720 = vmatprep.subr.mxu0 0.0
        %721 = vmatpush1.xpose.msra.mxu0 0.0
        %722 = vmatprep.subr.mxu0 0.0
        %723 = vmatpush1.xpose.msra.mxu0 0.0
        %724 = vmatprep.subr.mxu0 0.0
        %725 = vmatpush1.xpose.msra.mxu0 0.0
        %726 = vmatprep.subr.mxu0 0.0
        %727 = vmatpush1.xpose.msra.mxu0 0.0
        %728 = vmatprep.mubr.f32.mxu0 0.0
        %729 = vmatmul.mubr.f32.gmra.mrb[0].mxu0 %v660
        %v730 = vpop.f32.mrb[0].mxu0
        %v731 = vadd.f32 0.0, %v730
        %v732 = vpop.f32.mrb[0].mxu0
        %733 = vdwg.mxu0
        %v734 = vmul.f32 %v731, 0.17677669
        %v735 = vadd.f32 %v734, %v300
        %v736 = vsel %vm383, %v735, -inf
        %737 = vmax.xlane.f32.xlu0 %v736
        %v738 = vpop.xlane.xlu0 %737
        %v739 = vsub.f32 %v735, %v738
        %v740 = vmul.f32 %v739, 1.442695
        %v741 = vpow.pop %v740
        %v742 = vsel %vm383, %v741, 0.0
        %743 = vadd.xlane.f32.xlu0 %v742
        %v744 = vpop.xlane.xlu0 %743
        %v745 = vrcp.pop %v744
        %v746 = vmul.f32 %v741, %v745
        %s747 = scalar_lea.vmem %s294, 16 [#allocation9]
        %748 = vst.msk [vmem:[%s747] sm:$0xff] %vm383, %v746
        %750 = vrot.lane.b32.xlu0 %v653, 64
        %v751 = vpop.permute.xlu0 %750
        %v754 = vsel %vm383, %v746, 0
        %756 = vmatprep.subr.mxu0 0.0
        %757 = vmatpush1.msra.mxu0 %v751
        %758 = vmatprep.subr.mxu0 0.0
        %759 = vmatpush1.msra.mxu0 0.0
        %760 = vmatprep.subr.mxu0 0.0
        %761 = vmatpush1.msra.mxu0 0.0
        %762 = vmatprep.subr.mxu0 0.0
        %763 = vmatpush1.msra.mxu0 0.0
        %764 = vmatprep.subr.mxu0 0.0
        %765 = vmatpush1.msra.mxu0 0.0
        %766 = vmatprep.subr.mxu0 0.0
        %767 = vmatpush1.msra.mxu0 0.0
        %768 = vmatprep.subr.mxu0 0.0
        %769 = vmatpush1.msra.mxu0 0.0
        %770 = vmatprep.subr.mxu0 0.0
        %771 = vmatpush1.msra.mxu0 0.0
        %772 = vmatprep.subr.mxu0 0.0
        %773 = vmatpush1.msra.mxu0 0.0
        %774 = vmatprep.subr.mxu0 0.0
        %775 = vmatpush1.msra.mxu0 0.0
        %776 = vmatprep.subr.mxu0 0.0
        %777 = vmatpush1.msra.mxu0 0.0
        %778 = vmatprep.subr.mxu0 0.0
        %779 = vmatpush1.msra.mxu0 0.0
        %780 = vmatprep.subr.mxu0 0.0
        %781 = vmatpush1.msra.mxu0 0.0
        %782 = vmatprep.subr.mxu0 0.0
        %783 = vmatpush1.msra.mxu0 0.0
        %784 = vmatprep.subr.mxu0 0.0
        %785 = vmatpush1.msra.mxu0 0.0
        %786 = vmatprep.subr.mxu0 0.0
        %787 = vmatpush1.msra.mxu0 0.0
        %788 = vmatprep.subr.mxu0 0.0
        %789 = vmatpush1.msra.mxu0 0.0
        %790 = vmatprep.subr.mxu0 0.0
        %791 = vmatpush1.msra.mxu0 0.0
        %792 = vmatprep.subr.mxu0 0.0
        %793 = vmatpush1.msra.mxu0 0.0
        %794 = vmatprep.subr.mxu0 0.0
        %795 = vmatpush1.msra.mxu0 0.0
        %796 = vmatprep.subr.mxu0 0.0
        %797 = vmatpush1.msra.mxu0 0.0
        %798 = vmatprep.subr.mxu0 0.0
        %799 = vmatpush1.msra.mxu0 0.0
        %800 = vmatprep.subr.mxu0 0.0
        %801 = vmatpush1.msra.mxu0 0.0
        %802 = vmatprep.subr.mxu0 0.0
        %803 = vmatpush1.msra.mxu0 0.0
        %804 = vmatprep.subr.mxu0 0.0
        %805 = vmatpush1.msra.mxu0 0.0
        %806 = vmatprep.subr.mxu0 0.0
        %807 = vmatpush1.msra.mxu0 0.0
        %808 = vmatprep.subr.mxu0 0.0
        %809 = vmatpush1.msra.mxu0 0.0
        %810 = vmatprep.subr.mxu0 0.0
        %811 = vmatpush1.msra.mxu0 0.0
        %812 = vmatprep.subr.mxu0 0.0
        %813 = vmatpush1.msra.mxu0 0.0
        %814 = vmatprep.subr.mxu0 0.0
        %815 = vmatpush1.msra.mxu0 0.0
        %816 = vmatprep.subr.mxu0 0.0
        %817 = vmatpush1.msra.mxu0 0.0
        %818 = vmatprep.subr.mxu0 0.0
        %819 = vmatpush1.msra.mxu0 0.0
        %820 = vmatprep.mubr.f32.mxu0 0.0
        %821 = vmatmul.mubr.f32.gmra.mrb[0].mxu0 %v754
        %v822 = vpop.f32.mrb[0].mxu0
        %v823 = vadd.f32 0.0, %v822
        %v824 = vpop.f32.mrb[0].mxu0
        %825 = vdwg.mxu0
        %827 = vrot.lane.b32.xlu0 %v823, 64
        %v828 = vpop.permute.xlu0 %827
        %vm830 = vcmask 785920
        %831 = vst.msk [vmem:[%s287] sm:$0xff] %vm830, %v828
        %v832 = vld [vmem:[%s237] sm:$0xff]
        %v833 = vld [vmem:[%s246] sm:$0xff]
        %v834 = vld [vmem:[%s255] sm:$0xff]
        %836 = vrot.lane.b32.xlu0 %v832, 32
        %v837 = vpop.permute.xlu0 %836
        %839 = vrot.lane.b32.xlu0 %v833, 32
        %v840 = vpop.permute.xlu0 %839
        %v841 = vsel %vm304, %v837, 0
        %v843 = vsel %vm304, %v840, 0
        %845 = vmatprep.subr.mxu0 0.0
        %846 = vmatpush1.xpose.msra.mxu0 %v843
        %847 = vmatprep.subr.mxu0 0.0
        %848 = vmatpush1.xpose.msra.mxu0 0.0
        %849 = vmatprep.subr.mxu0 0.0
        %850 = vmatpush1.xpose.msra.mxu0 0.0
        %851 = vmatprep.subr.mxu0 0.0
        %852 = vmatpush1.xpose.msra.mxu0 0.0
        %853 = vmatprep.subr.mxu0 0.0
        %854 = vmatpush1.xpose.msra.mxu0 0.0
        %855 = vmatprep.subr.mxu0 0.0
        %856 = vmatpush1.xpose.msra.mxu0 0.0
        %857 = vmatprep.subr.mxu0 0.0
        %858 = vmatpush1.xpose.msra.mxu0 0.0
        %859 = vmatprep.subr.mxu0 0.0
        %860 = vmatpush1.xpose.msra.mxu0 0.0
        %861 = vmatprep.subr.mxu0 0.0
        %862 = vmatpush1.xpose.msra.mxu0 0.0
        %863 = vmatprep.subr.mxu0 0.0
        %864 = vmatpush1.xpose.msra.mxu0 0.0
        %865 = vmatprep.subr.mxu0 0.0
        %866 = vmatpush1.xpose.msra.mxu0 0.0
        %867 = vmatprep.subr.mxu0 0.0
        %868 = vmatpush1.xpose.msra.mxu0 0.0
        %869 = vmatprep.subr.mxu0 0.0
        %870 = vmatpush1.xpose.msra.mxu0 0.0
        %871 = vmatprep.subr.mxu0 0.0
        %872 = vmatpush1.xpose.msra.mxu0 0.0
        %873 = vmatprep.subr.mxu0 0.0
        %874 = vmatpush1.xpose.msra.mxu0 0.0
        %875 = vmatprep.subr.mxu0 0.0
        %876 = vmatpush1.xpose.msra.mxu0 0.0
        %877 = vmatprep.subr.mxu0 0.0
        %878 = vmatpush1.xpose.msra.mxu0 0.0
        %879 = vmatprep.subr.mxu0 0.0
        %880 = vmatpush1.xpose.msra.mxu0 0.0
        %881 = vmatprep.subr.mxu0 0.0
        %882 = vmatpush1.xpose.msra.mxu0 0.0
        %883 = vmatprep.subr.mxu0 0.0
        %884 = vmatpush1.xpose.msra.mxu0 0.0
        %885 = vmatprep.subr.mxu0 0.0
        %886 = vmatpush1.xpose.msra.mxu0 0.0
        %887 = vmatprep.subr.mxu0 0.0
        %888 = vmatpush1.xpose.msra.mxu0 0.0
        %889 = vmatprep.subr.mxu0 0.0
        %890 = vmatpush1.xpose.msra.mxu0 0.0
        %891 = vmatprep.subr.mxu0 0.0
        %892 = vmatpush1.xpose.msra.mxu0 0.0
        %893 = vmatprep.subr.mxu0 0.0
        %894 = vmatpush1.xpose.msra.mxu0 0.0
        %895 = vmatprep.subr.mxu0 0.0
        %896 = vmatpush1.xpose.msra.mxu0 0.0
        %897 = vmatprep.subr.mxu0 0.0
        %898 = vmatpush1.xpose.msra.mxu0 0.0
        %899 = vmatprep.subr.mxu0 0.0
        %900 = vmatpush1.xpose.msra.mxu0 0.0
        %901 = vmatprep.subr.mxu0 0.0
        %902 = vmatpush1.xpose.msra.mxu0 0.0
        %903 = vmatprep.subr.mxu0 0.0
        %904 = vmatpush1.xpose.msra.mxu0 0.0
        %905 = vmatprep.subr.mxu0 0.0
        %906 = vmatpush1.xpose.msra.mxu0 0.0
        %907 = vmatprep.subr.mxu0 0.0
        %908 = vmatpush1.xpose.msra.mxu0 0.0
        %909 = vmatprep.mubr.f32.mxu0 0.0
        %910 = vmatmul.mubr.f32.gmra.mrb[0].mxu0 %v841
        %v911 = vpop.f32.mrb[0].mxu0
        %v912 = vadd.f32 0.0, %v911
        %v913 = vpop.f32.mrb[0].mxu0
        %914 = vdwg.mxu0
        %v915 = vmul.f32 %v912, 0.17677669
        %v916 = vadd.f32 %v915, %v300
        %v917 = vsel %vm383, %v916, -inf
        %918 = vmax.xlane.f32.xlu0 %v917
        %v919 = vpop.xlane.xlu0 %918
        %v920 = vsub.f32 %v916, %v919
        %v921 = vmul.f32 %v920, 1.442695
        %v922 = vpow.pop %v921
        %v923 = vsel %vm383, %v922, 0.0
        %924 = vadd.xlane.f32.xlu0 %v923
        %v925 = vpop.xlane.xlu0 %924
        %v926 = vrcp.pop %v925
        %v927 = vmul.f32 %v922, %v926
        %s928 = scalar_lea.vmem %s294, 24 [#allocation9]
        %929 = vst.msk [vmem:[%s928] sm:$0xff] %vm383, %v927
        %931 = vrot.lane.b32.xlu0 %v834, 32
        %v932 = vpop.permute.xlu0 %931
        %v935 = vsel %vm383, %v927, 0
        %937 = vmatprep.subr.mxu0 0.0
        %938 = vmatpush1.msra.mxu0 %v932
        %939 = vmatprep.subr.mxu0 0.0
        %940 = vmatpush1.msra.mxu0 0.0
        %941 = vmatprep.subr.mxu0 0.0
        %942 = vmatpush1.msra.mxu0 0.0
        %943 = vmatprep.subr.mxu0 0.0
        %944 = vmatpush1.msra.mxu0 0.0
        %945 = vmatprep.subr.mxu0 0.0
        %946 = vmatpush1.msra.mxu0 0.0
        %947 = vmatprep.subr.mxu0 0.0
        %948 = vmatpush1.msra.mxu0 0.0
        %949 = vmatprep.subr.mxu0 0.0
        %950 = vmatpush1.msra.mxu0 0.0
        %951 = vmatprep.subr.mxu0 0.0
        %952 = vmatpush1.msra.mxu0 0.0
        %953 = vmatprep.subr.mxu0 0.0
        %954 = vmatpush1.msra.mxu0 0.0
        %955 = vmatprep.subr.mxu0 0.0
        %956 = vmatpush1.msra.mxu0 0.0
        %957 = vmatprep.subr.mxu0 0.0
        %958 = vmatpush1.msra.mxu0 0.0
        %959 = vmatprep.subr.mxu0 0.0
        %960 = vmatpush1.msra.mxu0 0.0
        %961 = vmatprep.subr.mxu0 0.0
        %962 = vmatpush1.msra.mxu0 0.0
        %963 = vmatprep.subr.mxu0 0.0
        %964 = vmatpush1.msra.mxu0 0.0
        %965 = vmatprep.subr.mxu0 0.0
        %966 = vmatpush1.msra.mxu0 0.0
        %967 = vmatprep.subr.mxu0 0.0
        %968 = vmatpush1.msra.mxu0 0.0
        %969 = vmatprep.subr.mxu0 0.0
        %970 = vmatpush1.msra.mxu0 0.0
        %971 = vmatprep.subr.mxu0 0.0
        %972 = vmatpush1.msra.mxu0 0.0
        %973 = vmatprep.subr.mxu0 0.0
        %974 = vmatpush1.msra.mxu0 0.0
        %975 = vmatprep.subr.mxu0 0.0
        %976 = vmatpush1.msra.mxu0 0.0
        %977 = vmatprep.subr.mxu0 0.0
        %978 = vmatpush1.msra.mxu0 0.0
        %979 = vmatprep.subr.mxu0 0.0
        %980 = vmatpush1.msra.mxu0 0.0
        %981 = vmatprep.subr.mxu0 0.0
        %982 = vmatpush1.msra.mxu0 0.0
        %983 = vmatprep.subr.mxu0 0.0
        %984 = vmatpush1.msra.mxu0 0.0
        %985 = vmatprep.subr.mxu0 0.0
        %986 = vmatpush1.msra.mxu0 0.0
        %987 = vmatprep.subr.mxu0 0.0
        %988 = vmatpush1.msra.mxu0 0.0
        %989 = vmatprep.subr.mxu0 0.0
        %990 = vmatpush1.msra.mxu0 0.0
        %991 = vmatprep.subr.mxu0 0.0
        %992 = vmatpush1.msra.mxu0 0.0
        %993 = vmatprep.subr.mxu0 0.0
        %994 = vmatpush1.msra.mxu0 0.0
        %995 = vmatprep.subr.mxu0 0.0
        %996 = vmatpush1.msra.mxu0 0.0
        %997 = vmatprep.subr.mxu0 0.0
        %998 = vmatpush1.msra.mxu0 0.0
        %999 = vmatprep.subr.mxu0 0.0
        %1000 = vmatpush1.msra.mxu0 0.0
        %1001 = vmatprep.mubr.f32.mxu0 0.0
        %1002 = vmatmul.mubr.f32.gmra.mrb[0].mxu0 %v935
        %v1003 = vpop.f32.mrb[0].mxu0
        %v1004 = vadd.f32 0.0, %v1003
        %v1005 = vpop.f32.mrb[0].mxu0
        %1006 = vdwg.mxu0
        %1008 = vrot.lane.b32.xlu0 %v1004, 96
        %v1009 = vpop.permute.xlu0 %1008
        %vm1011 = vcmask 1048320
        %1012 = vst.msk [vmem:[%s287] sm:$0xff] %vm1011, %v1009
        %s1013 = sand.u32 %s114, 1
        %s1014 = scalar_lea.sflag [#allocation4], %s1013
        %s1015 = sand.u32 %s114, 1
        %s1016 = smul.addr %s1015, 8
        %s1017 = scalar_lea.vmem [#allocation8], %s1016
        %s1018 = sand.u32 %s140, 1
        %s1019 = scalar_lea.sflag [#allocation10], %s1018
        %s1020 = sand.u32 %s140, 1
        %s1021 = smul.addr %s1020, 32
        %s1022 = scalar_lea.vmem [#allocation9], %s1021
        // Predicated region
        $region45: #{tpu_custom_call.1} parent=31 // pred_check
          %p1023 = pneg %p124
        $region46: #{tpu_custom_call.1} parent=31 // pred_check_branch
          %1025 = sbr.rel (%p1023) target = $region48
        $region47: #{tpu_custom_call.1} parent=31 // pred_region
          %s1027 = ssub.s32 128, 128
          %1028 = vsyncadd %s1014, %s1027
          %s1029 = smul.addr %s28, 128
          %s1030 = scalar_lea.hbm %s3, %s1029
          %s1032 = sshll.u32 %s1017, 4
          %s1033 = int_to_ptr.vmem [resolvable:$true] %s1032
          %1035 = dma.vmem_to_hbm [thread:$0]  %s1033, 128, %s1030, %s1014
        $region48: #{tpu_custom_call.1} parent=31 // pred_fallthru
          _
        // Predicated region
        $region49: #{tpu_custom_call.1} parent=31 // pred_check
          %p1036 = pneg %p150
        $region50: #{tpu_custom_call.1} parent=31 // pred_check_branch
          %1038 = sbr.rel (%p1036) target = $region52
        $region51: #{tpu_custom_call.1} parent=31 // pred_region
          %s1040 = ssub.s32 512, 512
          %1041 = vsyncadd %s1019, %s1040
          %s1042 = smul.addr %s28, 4
          %s1043 = smul.addr %s1042, 128
          %s1044 = scalar_lea.hbm %s4, %s1043
          %s1045 = sshll.u32 %s1022, 4
          %s1046 = int_to_ptr.vmem [resolvable:$true] %s1045
          %1051 = dma.vmem_to_hbm [thread:$0]  %s1046, 512, %s1044, %s1019, 128, 128, 8
        $region52: #{tpu_custom_call.1} parent=31 // pred_fallthru
          _
      $region32: #{tpu_custom_call.1} parent=5 // pred_fallthru
        _
      %p1052 = scmp.le.s32.totalorder 2, %s23
      // Predicated region
      $region53: #{tpu_custom_call.1} parent=5 // pred_check
        %p1053 = pneg %p1052
      $region54: #{tpu_custom_call.1} parent=5 // pred_check_branch
        %1055 = sbr.rel (%p1053) target = $region56
      $region55: #{tpu_custom_call.1} parent=5 // pred_region
        %s1056 = ssub.s32 %s23, 2
        // Predicated region
        $region57: #{tpu_custom_call.1} parent=55 // pred_check
          %p1057 = pneg %p130
        $region58: #{tpu_custom_call.1} parent=55 // pred_check_branch
          %1059 = sbr.rel (%p1057) target = $region60
        $region59: #{tpu_custom_call.1} parent=55 // pred_region
          %s1060 = sand.u32 %s115, 1
          %s1061 = scalar_lea.sflag [#allocation4], %s1060
          %s1062 = sand.u32 %s115, 1
          %s1063 = smul.addr %s1062, 8
          %s1064 = scalar_lea.vmem [#allocation8], %s1063
          %1065 = dma.done %s1061, 128
        $region60: #{tpu_custom_call.1} parent=55 // pred_fallthru
          _
        // Predicated region
        $region61: #{tpu_custom_call.1} parent=55 // pred_check
          %p1066 = pneg %p156
        $region62: #{tpu_custom_call.1} parent=55 // pred_check_branch
          %1068 = sbr.rel (%p1066) target = $region64
        $region63: #{tpu_custom_call.1} parent=55 // pred_region
          %s1069 = sand.u32 %s141, 1
          %s1070 = scalar_lea.sflag [#allocation10], %s1069
          %s1071 = sand.u32 %s141, 1
          %s1072 = smul.addr %s1071, 32
          %s1073 = scalar_lea.vmem [#allocation9], %s1072
          %1074 = dma.done %s1070, 512
        $region64: #{tpu_custom_call.1} parent=55 // pred_fallthru
          _
      $region56: #{tpu_custom_call.1} parent=5 // pred_fallthru
        _
    $region6: #{tpu_custom_call.1} parent=1 // loop_footer
      %s27 = sadd.s32 1, %s23
    $region7: #{tpu_custom_call.1} parent=1 // loop_footer_branch
      %22 = sbr.rel target = $region3
    $region8: #{tpu_custom_call.1} parent=1 // loop_exit
      _
    %1075 = vsyncpa [#allocation3], 1
    %s1076 = scalar_lea.sflag [#allocation3], 1
    %1077 = vsyncpa %s1076, 1
    %1078 = vsyncpa [#allocation6], 1
    %s1079 = scalar_lea.sflag [#allocation6], 1
    %1080 = vsyncpa %s1079, 1
    %1081 = vsyncpa [#allocation4], 1
    %s1082 = scalar_lea.sflag [#allocation4], 1
    %1083 = vsyncpa %s1082, 1
    %1084 = vsyncpa [#allocation10], 1
    %s1085 = scalar_lea.sflag [#allocation10], 1
    %1086 = vsyncpa %s1085, 1

</llo_original>
